<compile_context>
chip_gen: v7x
topology: tpu7x:2x2x1
jax: 0.10.0
libtpu: 0.0.40
codegen_flags: <defaults>
</compile_context>

<pallas_src>
import functools

import jax
import jax.numpy as jnp
from jax import lax
from jax.experimental import pallas as pl
from jax.experimental.pallas import tpu as pltpu

MIN_STDEV = 0.01
OUT_PAD = 8  # out_len (5 or 6) padded to one full sublane group


def _round_up(x, m):
    return ((x + m - 1) // m) * m


def _output_model_kernel(xT_ref, w1t_ref, b1_ref, w2t_ref, b2_ref,
                         w3t_ref, b3_ref, o_ref):
    # xT_ref: (d_k, TN) tile (features on sublanes, rows on lanes).
    x = xT_ref[...]
    cdt = w1t_ref.dtype  # matmul compute dtype (f32 or bf16)

    # Layer 1: W1^T @ x^T + b1, ReLU  (f32 accumulation on the MXU)
    h = jnp.dot(w1t_ref[...], x.astype(cdt), preferred_element_type=jnp.float32)
    h = jnp.maximum(h + b1_ref[...], 0.0)

    # Layer 2: W2^T @ h + b2, ReLU
    h = jnp.dot(w2t_ref[...], h.astype(cdt), preferred_element_type=jnp.float32)
    h = jnp.maximum(h + b2_ref[...], 0.0)

    # Layer 3: W3^T (padded to 8 rows) @ h + b3  -> (OUT_PAD, TN)
    pred = jnp.dot(w3t_ref[...], h.astype(cdt),
                   preferred_element_type=jnp.float32)
    pred = pred + b3_ref[...]

    # Per-output-channel transforms via sublane-index masks (rows 0,1,5..7
    # pass through; padded rows 6/7 are discarded in the wrapper).
    row = lax.broadcasted_iota(jnp.int32, pred.shape, 0)
    sp = jnp.logaddexp(pred, 0.0) + MIN_STDEV      # softplus + min_stdev
    th = jnp.tanh(pred) * 0.9                      # tanh * 0.9
    out = jnp.where((row == 2) | (row == 3), sp,
                    jnp.where(row == 4, th, pred))
    o_ref[...] = out.astype(o_ref.dtype)


@functools.partial(jax.jit, static_argnums=(7, 8))
def output_model_forward(agent_latent_state, w1, b1, w2, b2, w3, b3,
                         predict_yaw=False, use_bf16=False):
    T, BK, d_k = agent_latent_state.shape
    out_len = 6 if predict_yaw else 5
    assert w3.shape[1] == out_len

    N = T * BK

    # Row tile: big enough to amortise per-step overhead, small enough to keep
    # >=2 grid programs when there is enough work (v7x has 2 TensorCores and a
    # grid of 1 would idle one of them).
    N128 = _round_up(N, 128)
    TN = min(2048, N128)
    if N128 >= 256:
        TN = min(TN, _round_up(-(-N128 // 2), 128))
    Np = _round_up(N, TN)
    grid = (Np // TN,)

    compute_dtype = jnp.bfloat16 if use_bf16 else jnp.float32

    # Transposed (feature-major) layout: rows on the lane axis.
    xT = jnp.transpose(agent_latent_state.reshape(N, d_k)).astype(compute_dtype)
    if Np != N:
        xT = jnp.pad(xT, ((0, 0), (0, Np - N)))

    w1t = jnp.transpose(w1).astype(compute_dtype)
    w2t = jnp.transpose(w2).astype(compute_dtype)
    w3t = jnp.zeros((OUT_PAD, d_k), compute_dtype)
    w3t = w3t.at[:out_len].set(jnp.transpose(w3).astype(compute_dtype))
    b1c = b1.reshape(d_k, 1).astype(jnp.float32)
    b2c = b2.reshape(d_k, 1).astype(jnp.float32)
    b3c = jnp.zeros((OUT_PAD, 1), jnp.float32).at[:out_len, 0].set(
        b3.astype(jnp.float32))

    outT = pl.pallas_call(
        _output_model_kernel,
        out_shape=jax.ShapeDtypeStruct((OUT_PAD, Np), jnp.float32),
        grid_spec=pltpu.PrefetchScalarGridSpec(
            num_scalar_prefetch=0,
            grid=grid,
            in_specs=[
                pl.BlockSpec((d_k, TN), lambda i: (0, i)),       # x^T tile
                pl.BlockSpec((d_k, d_k), lambda i: (0, 0)),      # W1^T
                pl.BlockSpec((d_k, 1), lambda i: (0, 0)),        # b1
                pl.BlockSpec((d_k, d_k), lambda i: (0, 0)),      # W2^T
                pl.BlockSpec((d_k, 1), lambda i: (0, 0)),        # b2
                pl.BlockSpec((OUT_PAD, d_k), lambda i: (0, 0)),  # W3^T (padded)
                pl.BlockSpec((OUT_PAD, 1), lambda i: (0, 0)),    # b3 (padded)
            ],
            out_specs=pl.BlockSpec((OUT_PAD, TN), lambda i: (0, i)),
        ),
        compiler_params=pltpu.CompilerParams(
            dimension_semantics=("parallel",)),
    )(xT, w1t, b1c, w2t, b2c, w3t, b3c)

    # Drop sublane padding / lane padding and restore (T, BK, out_len).
    out = jnp.transpose(outT[:out_len, :N]).reshape(T, BK, out_len)
    return out


def xavier_normal(key, fan_in, fan_out, gain):
    std = gain * jnp.sqrt(2.0 / (fan_in + fan_out))
    return std * jax.random.normal(key, (fan_in, fan_out), dtype=jnp.float32)


def make_params(key, d_k, out_len):
    gain = jnp.sqrt(2.0)  # np.sqrt(2) in the PyTorch init_
    k1, k2, k3 = jax.random.split(key, 3)
    w1 = xavier_normal(k1, d_k, d_k, gain)
    w2 = xavier_normal(k2, d_k, d_k, gain)
    w3 = xavier_normal(k3, d_k, out_len, gain)
    b1 = jnp.zeros((d_k,), jnp.float32)
    b2 = jnp.zeros((d_k,), jnp.float32)
    b3 = jnp.zeros((out_len,), jnp.float32)
    return w1, b1, w2, b2, w3, b3


def reference_forward(x, w1, b1, w2, b2, w3, b3, predict_yaw=False):
    T, BK, d_k = x.shape
    h = x.reshape(-1, d_k)
    h = jnp.maximum(h @ w1 + b1, 0.0)
    h = jnp.maximum(h @ w2 + b2, 0.0)
    pred = (h @ w3 + b3).reshape(T, BK, -1)
    x_mean = pred[:, :, 0]
    y_mean = pred[:, :, 1]
    x_sigma = jax.nn.softplus(pred[:, :, 2]) + MIN_STDEV
    y_sigma = jax.nn.softplus(pred[:, :, 3]) + MIN_STDEV
    rho = jnp.tanh(pred[:, :, 4]) * 0.9
    cols = [x_mean, y_mean, x_sigma, y_sigma, rho]
    if predict_yaw:
        cols.append(pred[:, :, 5])
    return jnp.stack(cols, axis=2)


if __name__ == "__main__":
    key = jax.random.PRNGKey(0)
    d_k = 64

    # (T, BK, predict_yaw): small case (grid of 1) and a padded multi-program
    # case that exercises the yaw pass-through column.
    cases = [(8, 16, False), (10, 40, True)]

    for (T, BK, predict_yaw) in cases:
        out_len = 6 if predict_yaw else 5
        key, k_in, k_p = jax.random.split(key, 3)
        agent_latent_state = jax.random.normal(k_in, (T, BK, d_k),
                                               dtype=jnp.float32)
        w1, b1, w2, b2, w3, b3 = make_params(k_p, d_k, out_len)

        out = output_model_forward(agent_latent_state, w1, b1, w2, b2, w3, b3,
                                   predict_yaw)
        out = jax.block_until_ready(out)

        ref = reference_forward(agent_latent_state, w1, b1, w2, b2, w3, b3,
                                predict_yaw)
        assert out.shape == (T, BK, out_len), out.shape
        assert jnp.allclose(out, ref, atol=1e-5, rtol=1e-5), \
            float(jnp.max(jnp.abs(out - ref)))

    print("KERNEL_OK")
</pallas_src>

<mosaic_0001>
module attributes {stable_mosaic.version = 11 : i64} {
  func.func @_output_model_kernel(%arg0: i32, %arg1: memref<64x128xf32, #tpu.memory_space<vmem>>, %arg2: memref<64x64xf32, #tpu.memory_space<vmem>>, %arg3: memref<64x1xf32, #tpu.memory_space<vmem>>, %arg4: memref<64x64xf32, #tpu.memory_space<vmem>>, %arg5: memref<64x1xf32, #tpu.memory_space<vmem>>, %arg6: memref<8x64xf32, #tpu.memory_space<vmem>>, %arg7: memref<8x1xf32, #tpu.memory_space<vmem>>, %arg8: memref<8x128xf32, #tpu.memory_space<vmem>>) attributes {dimension_semantics = [#tpu.dimension_semantics<parallel>], iteration_bounds = array<i64: 1>, scalar_prefetch = 0 : i64, scratch_operands = 0 : i64, tpu.core_type = #tpu.core_type<tc>, window_params = [{transform_indices = @transform_0, window_bounds = array<i64: 64, 128>}, {pipeline_mode = #tpu.pipeline_mode<synchronous>, transform_indices = @transform_1, window_bounds = array<i64: 64, 64>}, {pipeline_mode = #tpu.pipeline_mode<synchronous>, transform_indices = @transform_2, window_bounds = array<i64: 64, 1>}, {pipeline_mode = #tpu.pipeline_mode<synchronous>, transform_indices = @transform_3, window_bounds = array<i64: 64, 64>}, {pipeline_mode = #tpu.pipeline_mode<synchronous>, transform_indices = @transform_4, window_bounds = array<i64: 64, 1>}, {pipeline_mode = #tpu.pipeline_mode<synchronous>, transform_indices = @transform_5, window_bounds = array<i64: 8, 64>}, {pipeline_mode = #tpu.pipeline_mode<synchronous>, transform_indices = @transform_6, window_bounds = array<i64: 8, 1>}, {transform_indices = @transform_7, window_bounds = array<i64: 8, 128>}]} {
    %c0 = arith.constant 0 : index
    %c0_0 = arith.constant 0 : index
    %0 = vector.load %arg1[%c0, %c0_0] : memref<64x128xf32, #tpu.memory_space<vmem>>, vector<64x128xf32>
    %c0_1 = arith.constant 0 : index
    %c0_2 = arith.constant 0 : index
    %1 = vector.load %arg2[%c0_1, %c0_2] : memref<64x64xf32, #tpu.memory_space<vmem>>, vector<64x64xf32>
    %cst = arith.constant dense<0.000000e+00> : vector<64x128xf32>
    %2 = tpu.matmul %1, %0, %cst {dimension_numbers = #tpu.dot_dimension_numbers<[1], [0], [0], [1], [0, 0, 1, 1], [], []>} : vector<64x64xf32>, vector<64x128xf32>, vector<64x128xf32> -> vector<64x128xf32>
    %c0_3 = arith.constant 0 : index
    %c0_4 = arith.constant 0 : index
    %3 = vector.load %arg3[%c0_3, %c0_4] : memref<64x1xf32, #tpu.memory_space<vmem>>, vector<64x1xf32>
    %4 = vector.broadcast %3 : vector<64x1xf32> to vector<64x128xf32>
    %5 = arith.addf %2, %4 : vector<64x128xf32>
    %cst_5 = arith.constant 0.000000e+00 : f32
    %6 = vector.broadcast %cst_5 : f32 to vector<64x128xf32>
    %7 = arith.maximumf %5, %6 : vector<64x128xf32>
    %c0_6 = arith.constant 0 : index
    %c0_7 = arith.constant 0 : index
    %8 = vector.load %arg4[%c0_6, %c0_7] : memref<64x64xf32, #tpu.memory_space<vmem>>, vector<64x64xf32>
    %cst_8 = arith.constant dense<0.000000e+00> : vector<64x128xf32>
    %9 = tpu.matmul %8, %7, %cst_8 {dimension_numbers = #tpu.dot_dimension_numbers<[1], [0], [0], [1], [0, 0, 1, 1], [], []>} : vector<64x64xf32>, vector<64x128xf32>, vector<64x128xf32> -> vector<64x128xf32>
    %c0_9 = arith.constant 0 : index
    %c0_10 = arith.constant 0 : index
    %10 = vector.load %arg5[%c0_9, %c0_10] : memref<64x1xf32, #tpu.memory_space<vmem>>, vector<64x1xf32>
    %11 = vector.broadcast %10 : vector<64x1xf32> to vector<64x128xf32>
    %12 = arith.addf %9, %11 : vector<64x128xf32>
    %cst_11 = arith.constant 0.000000e+00 : f32
    %13 = vector.broadcast %cst_11 : f32 to vector<64x128xf32>
    %14 = arith.maximumf %12, %13 : vector<64x128xf32>
    %c0_12 = arith.constant 0 : index
    %c0_13 = arith.constant 0 : index
    %15 = vector.load %arg6[%c0_12, %c0_13] : memref<8x64xf32, #tpu.memory_space<vmem>>, vector<8x64xf32>
    %cst_14 = arith.constant dense<0.000000e+00> : vector<8x128xf32>
    %16 = tpu.matmul %15, %14, %cst_14 {dimension_numbers = #tpu.dot_dimension_numbers<[1], [0], [0], [1], [0, 0, 1, 1], [], []>} : vector<8x64xf32>, vector<64x128xf32>, vector<8x128xf32> -> vector<8x128xf32>
    %c0_15 = arith.constant 0 : index
    %c0_16 = arith.constant 0 : index
    %17 = vector.load %arg7[%c0_15, %c0_16] : memref<8x1xf32, #tpu.memory_space<vmem>>, vector<8x1xf32>
    %18 = vector.broadcast %17 : vector<8x1xf32> to vector<8x128xf32>
    %19 = arith.addf %16, %18 : vector<8x128xf32>
    %20 = tpu.iota {dimensions = array<i32: 0>} : vector<8x128xi32>
    %cst_17 = arith.constant 0.000000e+00 : f32
    %21 = vector.broadcast %cst_17 : f32 to vector<8x128xf32>
    %22 = arith.maximumf %19, %21 : vector<8x128xf32>
    %23 = vector.broadcast %cst_17 : f32 to vector<8x128xf32>
    %24 = arith.subf %19, %23 : vector<8x128xf32>
    %25 = arith.cmpf one, %24, %24 : vector<8x128xf32>
    %26 = vector.broadcast %cst_17 : f32 to vector<8x128xf32>
    %27 = arith.addf %19, %26 : vector<8x128xf32>
    %28 = math.absf %24 : vector<8x128xf32>
    %cst_18 = arith.constant 0.000000e+00 : f32
    %29 = vector.broadcast %cst_18 : f32 to vector<8x128xf32>
    %30 = arith.subf %29, %28 : vector<8x128xf32>
    %31 = math.exp %30 : vector<8x128xf32>
    %32 = math.log1p %31 : vector<8x128xf32>
    %33 = arith.addf %22, %32 : vector<8x128xf32>
    %34 = arith.select %25, %27, %33 : vector<8x128xi1>, vector<8x128xf32>
    %cst_19 = arith.constant 0.00999999977 : f32
    %35 = vector.broadcast %cst_19 : f32 to vector<8x128xf32>
    %36 = arith.addf %34, %35 : vector<8x128xf32>
    %37 = math.tanh %19 : vector<8x128xf32>
    %cst_20 = arith.constant 0.899999976 : f32
    %38 = vector.broadcast %cst_20 : f32 to vector<8x128xf32>
    %39 = arith.mulf %37, %38 : vector<8x128xf32>
    %c2_i32 = arith.constant 2 : i32
    %40 = vector.broadcast %c2_i32 : i32 to vector<8x128xi32>
    %41 = arith.cmpi eq, %20, %40 : vector<8x128xi32>
    %c3_i32 = arith.constant 3 : i32
    %42 = vector.broadcast %c3_i32 : i32 to vector<8x128xi32>
    %43 = arith.cmpi eq, %20, %42 : vector<8x128xi32>
    %44 = arith.ori %41, %43 : vector<8x128xi1>
    %c4_i32 = arith.constant 4 : i32
    %45 = vector.broadcast %c4_i32 : i32 to vector<8x128xi32>
    %46 = arith.cmpi eq, %20, %45 : vector<8x128xi32>
    %47 = arith.select %46, %39, %19 : vector<8x128xi1>, vector<8x128xf32>
    %48 = arith.select %44, %36, %47 : vector<8x128xi1>, vector<8x128xf32>
    %c0_21 = arith.constant 0 : index
    %c0_22 = arith.constant 0 : index
    %49 = vector.load %arg8[%c0_21, %c0_22] : memref<8x128xf32, #tpu.memory_space<vmem>>, vector<8x128xf32>
    tpu.vector_store %arg8[%c0_21, %c0_22], %48 {strides = array<i32>} : memref<8x128xf32, #tpu.memory_space<vmem>>, vector<8x128xf32>,
    return
  }
  func.func @transform_0(%arg0: i32) -> (i32, i32) {
    %c0_i32 = arith.constant 0 : i32
    %c0_i32_0 = arith.constant 0 : i32
    return %c0_i32, %arg0 : i32, i32
  }
  func.func @transform_1(%arg0: i32) -> (i32, i32) {
    %c0_i32 = arith.constant 0 : i32
    %c0_i32_0 = arith.constant 0 : i32
    %c0_i32_1 = arith.constant 0 : i32
    return %c0_i32, %c0_i32_0 : i32, i32
  }
  func.func @transform_2(%arg0: i32) -> (i32, i32) {
    %c0_i32 = arith.constant 0 : i32
    %c0_i32_0 = arith.constant 0 : i32
    %c0_i32_1 = arith.constant 0 : i32
    return %c0_i32, %c0_i32_0 : i32, i32
  }
  func.func @transform_3(%arg0: i32) -> (i32, i32) {
    %c0_i32 = arith.constant 0 : i32
    %c0_i32_0 = arith.constant 0 : i32
    %c0_i32_1 = arith.constant 0 : i32
    return %c0_i32, %c0_i32_0 : i32, i32
  }
  func.func @transform_4(%arg0: i32) -> (i32, i32) {
    %c0_i32 = arith.constant 0 : i32
    %c0_i32_0 = arith.constant 0 : i32
    %c0_i32_1 = arith.constant 0 : i32
    return %c0_i32, %c0_i32_0 : i32, i32
  }
  func.func @transform_5(%arg0: i32) -> (i32, i32) {
    %c0_i32 = arith.constant 0 : i32
    %c0_i32_0 = arith.constant 0 : i32
    %c0_i32_1 = arith.constant 0 : i32
    return %c0_i32, %c0_i32_0 : i32, i32
  }
  func.func @transform_6(%arg0: i32) -> (i32, i32) {
    %c0_i32 = arith.constant 0 : i32
    %c0_i32_0 = arith.constant 0 : i32
    %c0_i32_1 = arith.constant 0 : i32
    return %c0_i32, %c0_i32_0 : i32, i32
  }
  func.func @transform_7(%arg0: i32) -> (i32, i32) {
    %c0_i32 = arith.constant 0 : i32
    %c0_i32_0 = arith.constant 0 : i32
    return %c0_i32, %arg0 : i32, i32
  }
}

</mosaic_0001>

<llo_original>
// kernel: output_model_forward.1
$region0: #{output_model_forward.1}
  #allocation0 [shape = 'u32[]', space=smem, size = 0x4, offset = 0x4, fixed_abs, tag = 'smem constant byte address 0x4 - core index']
  #allocation1 [shape = 'u32[144,128]{1,0:T(1,128)}', space=vmem, size = 0x12000, scoped, tag = 'internal scratch']
  %s0 = inlined_call_operand.vmem [shape: f32[64,128], index: 0, kind: input, shape index: {}]
  %s1 = inlined_call_operand.vmem [shape: f32[64,64], index: 1, kind: input, shape index: {}]
  %s2 = inlined_call_operand.vmem [shape: f32[64,1], index: 2, kind: input, shape index: {}]
  %s3 = inlined_call_operand.vmem [shape: f32[64,64], index: 3, kind: input, shape index: {}]
  %s4 = inlined_call_operand.vmem [shape: f32[64,1], index: 4, kind: input, shape index: {}]
  %s5 = inlined_call_operand.vmem [shape: f32[8,64], index: 5, kind: input, shape index: {}]
  %s6 = inlined_call_operand.vmem [shape: f32[8,1], index: 6, kind: input, shape index: {}]
  %s7 = inlined_call_operand.vmem [shape: f32[8,128], index: 7, kind: output, shape index: {}]
  %s8 = sld [smem:[#allocation0]]
  $region38: #{output_model_forward.1} parent=0
    _
  %s10 = ssub.s32 1, %s8
  %s11 = scalar_select 0, %s10, %s8
  // Predicated region
  $region2: #{output_model_forward.1} parent=0 // pred_check
    _
  $region3: #{output_model_forward.1} parent=0 // pred_check_branch
    %13 = sbr.rel (0) target = $region5
  $region4: #{output_model_forward.1} parent=0 // pred_region
    _
  $region5: #{output_model_forward.1} parent=0 // pred_fallthru
    _
  // Predicated region
  $region6: #{output_model_forward.1} parent=0 // pred_check
    _
  $region7: #{output_model_forward.1} parent=0 // pred_check_branch
    %15 = sbr.rel (0) target = $region9
  $region8: #{output_model_forward.1} parent=0 // pred_region
    _
  $region9: #{output_model_forward.1} parent=0 // pred_fallthru
    _
  // Predicated region
  $region10: #{output_model_forward.1} parent=0 // pred_check
    _
  $region11: #{output_model_forward.1} parent=0 // pred_check_branch
    %17 = sbr.rel (0) target = $region13
  $region12: #{output_model_forward.1} parent=0 // pred_region
    _
  $region13: #{output_model_forward.1} parent=0 // pred_fallthru
    _
  // Predicated region
  $region14: #{output_model_forward.1} parent=0 // pred_check
    _
  $region15: #{output_model_forward.1} parent=0 // pred_check_branch
    %19 = sbr.rel (0) target = $region17
  $region16: #{output_model_forward.1} parent=0 // pred_region
    _
  $region17: #{output_model_forward.1} parent=0 // pred_fallthru
    _
  // Predicated region
  $region18: #{output_model_forward.1} parent=0 // pred_check
    _
  $region19: #{output_model_forward.1} parent=0 // pred_check_branch
    %21 = sbr.rel (0) target = $region21
  $region20: #{output_model_forward.1} parent=0 // pred_region
    _
  $region21: #{output_model_forward.1} parent=0 // pred_fallthru
    _
  // Predicated region
  $region22: #{output_model_forward.1} parent=0 // pred_check
    _
  $region23: #{output_model_forward.1} parent=0 // pred_check_branch
    %23 = sbr.rel (0) target = $region25
  $region24: #{output_model_forward.1} parent=0 // pred_region
    _
  $region25: #{output_model_forward.1} parent=0 // pred_fallthru
    _
  // Predicated region
  $region26: #{output_model_forward.1} parent=0 // pred_check
    _
  $region27: #{output_model_forward.1} parent=0 // pred_check_branch
    %25 = sbr.rel (0) target = $region29
  $region28: #{output_model_forward.1} parent=0 // pred_region
    _
  $region29: #{output_model_forward.1} parent=0 // pred_fallthru
    _
  %v26 = vld [vmem:[%s0] sm:$0xff]
  %v27 = vld [vmem:[%s0 + $0x8] sm:$0xff]
  %v28 = vld [vmem:[%s0 + $0x10] sm:$0xff]
  %v29 = vld [vmem:[%s0 + $0x18] sm:$0xff]
  %v30 = vld [vmem:[%s0 + $0x20] sm:$0xff]
  %v31 = vld [vmem:[%s0 + $0x28] sm:$0xff]
  %v32 = vld [vmem:[%s0 + $0x30] sm:$0xff]
  %v33 = vld [vmem:[%s0 + $0x38] sm:$0xff]
  %v34 = vld [vmem:[%s1] sm:$0xff]
  %v35 = vld [vmem:[%s1 + $0x8] sm:$0xff]
  %v36 = vld [vmem:[%s1 + $0x10] sm:$0xff]
  %v37 = vld [vmem:[%s1 + $0x18] sm:$0xff]
  %v38 = vld [vmem:[%s1 + $0x20] sm:$0xff]
  %v39 = vld [vmem:[%s1 + $0x28] sm:$0xff]
  %v40 = vld [vmem:[%s1 + $0x30] sm:$0xff]
  %v41 = vld [vmem:[%s1 + $0x38] sm:$0xff]
  %v42 = vld [vmem:[%s2] sm:$0xff]
  %v43 = vld [vmem:[%s2 + $0x8] sm:$0xff]
  %v44 = vld [vmem:[%s2 + $0x10] sm:$0xff]
  %v45 = vld [vmem:[%s2 + $0x18] sm:$0xff]
  %v46 = vld [vmem:[%s2 + $0x20] sm:$0xff]
  %v47 = vld [vmem:[%s2 + $0x28] sm:$0xff]
  %v48 = vld [vmem:[%s2 + $0x30] sm:$0xff]
  %v49 = vld [vmem:[%s2 + $0x38] sm:$0xff]
  %51 = vset.pattern.permute.xlu0 0
  %52 = vperm.xlu0 %51, %v42
  %v53 = vpop.permute.xlu0 %52
  %56 = vset.pattern.permute.xlu0 0
  %57 = vperm.xlu0 %56, %v43
  %v58 = vpop.permute.xlu0 %57
  %61 = vset.pattern.permute.xlu0 0
  %62 = vperm.xlu0 %61, %v44
  %v63 = vpop.permute.xlu0 %62
  %66 = vset.pattern.permute.xlu0 0
  %67 = vperm.xlu0 %66, %v45
  %v68 = vpop.permute.xlu0 %67
  %71 = vset.pattern.permute.xlu0 0
  %72 = vperm.xlu0 %71, %v46
  %v73 = vpop.permute.xlu0 %72
  %76 = vset.pattern.permute.xlu0 0
  %77 = vperm.xlu0 %76, %v47
  %v78 = vpop.permute.xlu0 %77
  %81 = vset.pattern.permute.xlu0 0
  %82 = vperm.xlu0 %81, %v48
  %v83 = vpop.permute.xlu0 %82
  %86 = vset.pattern.permute.xlu0 0
  %87 = vperm.xlu0 %86, %v49
  %v88 = vpop.permute.xlu0 %87
  %vm90 = vcmask 523264
  %v92 = vsel %vm90, %v34, 0
  %v95 = vsel %vm90, %v35, 0
  %v98 = vsel %vm90, %v36, 0
  %v101 = vsel %vm90, %v37, 0
  %v104 = vsel %vm90, %v38, 0
  %v107 = vsel %vm90, %v39, 0
  %v110 = vsel %vm90, %v40, 0
  %v113 = vsel %vm90, %v41, 0
  %115 = vmatprep.subr.mxu0 0.0
  %116 = vmatpush1.msra.mxu0 %v26
  %117 = vmatprep.subr.mxu0 0.0
  %118 = vmatpush1.msra.mxu0 %v27
  %119 = vmatprep.subr.mxu0 0.0
  %120 = vmatpush1.msra.mxu0 %v28
  %121 = vmatprep.subr.mxu0 0.0
  %122 = vmatpush1.msra.mxu0 %v29
  %123 = vmatprep.subr.mxu0 0.0
  %124 = vmatpush1.msra.mxu0 %v30
  %125 = vmatprep.subr.mxu0 0.0
  %126 = vmatpush1.msra.mxu0 %v31
  %127 = vmatprep.subr.mxu0 0.0
  %128 = vmatpush1.msra.mxu0 %v32
  %129 = vmatprep.subr.mxu0 0.0
  %130 = vmatpush1.msra.mxu0 %v33
  %131 = vmatprep.subr.mxu0 0.0
  %132 = vmatpush1.msra.mxu0 0.0
  %133 = vmatprep.subr.mxu0 0.0
  %134 = vmatpush1.msra.mxu0 0.0
  %135 = vmatprep.subr.mxu0 0.0
  %136 = vmatpush1.msra.mxu0 0.0
  %137 = vmatprep.subr.mxu0 0.0
  %138 = vmatpush1.msra.mxu0 0.0
  %139 = vmatprep.subr.mxu0 0.0
  %140 = vmatpush1.msra.mxu0 0.0
  %141 = vmatprep.subr.mxu0 0.0
  %142 = vmatpush1.msra.mxu0 0.0
  %143 = vmatprep.subr.mxu0 0.0
  %144 = vmatpush1.msra.mxu0 0.0
  %145 = vmatprep.subr.mxu0 0.0
  %146 = vmatpush1.msra.mxu0 0.0
  %147 = vmatprep.subr.mxu0 0.0
  %148 = vmatpush1.msra.mxu0 0.0
  %149 = vmatprep.subr.mxu0 0.0
  %150 = vmatpush1.msra.mxu0 0.0
  %151 = vmatprep.subr.mxu0 0.0
  %152 = vmatpush1.msra.mxu0 0.0
  %153 = vmatprep.subr.mxu0 0.0
  %154 = vmatpush1.msra.mxu0 0.0
  %155 = vmatprep.subr.mxu0 0.0
  %156 = vmatpush1.msra.mxu0 0.0
  %157 = vmatprep.subr.mxu0 0.0
  %158 = vmatpush1.msra.mxu0 0.0
  %159 = vmatprep.subr.mxu0 0.0
  %160 = vmatpush1.msra.mxu0 0.0
  %161 = vmatprep.subr.mxu0 0.0
  %162 = vmatpush1.msra.mxu0 0.0
  %163 = vmatprep.subr.mxu0 0.0
  %164 = vmatpush1.msra.mxu0 0.0
  %165 = vmatprep.subr.mxu0 0.0
  %166 = vmatpush1.msra.mxu0 0.0
  %167 = vmatprep.subr.mxu0 0.0
  %168 = vmatpush1.msra.mxu0 0.0
  %169 = vmatprep.subr.mxu0 0.0
  %170 = vmatpush1.msra.mxu0 0.0
  %171 = vmatprep.subr.mxu0 0.0
  %172 = vmatpush1.msra.mxu0 0.0
  %173 = vmatprep.subr.mxu0 0.0
  %174 = vmatpush1.msra.mxu0 0.0
  %175 = vmatprep.subr.mxu0 0.0
  %176 = vmatpush1.msra.mxu0 0.0
  %177 = vmatprep.subr.mxu0 0.0
  %178 = vmatpush1.msra.mxu0 0.0
  %179 = vmatprep.mubr.f32.mxu0 0.0
  %180 = vmatmul.mubr.f32.gmra.mrb[0].mxu0 %v92
  %v181 = vpop.f32.mrb[0].mxu0
  %v182 = vadd.f32 %v53, %v181
  %v183 = vpop.f32.mrb[0].mxu0
  %184 = vmatprep.mubr.f32.mxu0 0.0
  %185 = vmatmul.mubr.f32.gmra.mrb[0].mxu0 %v95
  %v186 = vpop.f32.mrb[0].mxu0
  %v187 = vadd.f32 %v58, %v186
  %v188 = vpop.f32.mrb[0].mxu0
  %189 = vmatprep.mubr.f32.mxu0 0.0
  %190 = vmatmul.mubr.f32.gmra.mrb[0].mxu0 %v98
  %v191 = vpop.f32.mrb[0].mxu0
  %v192 = vadd.f32 %v63, %v191
  %v193 = vpop.f32.mrb[0].mxu0
  %194 = vmatprep.mubr.f32.mxu0 0.0
  %195 = vmatmul.mubr.f32.gmra.mrb[0].mxu0 %v101
  %v196 = vpop.f32.mrb[0].mxu0
  %v197 = vadd.f32 %v68, %v196
  %v198 = vpop.f32.mrb[0].mxu0
  %199 = vmatprep.mubr.f32.mxu0 0.0
  %200 = vmatmul.mubr.f32.gmra.mrb[0].mxu0 %v104
  %v201 = vpop.f32.mrb[0].mxu0
  %v202 = vadd.f32 %v73, %v201
  %v203 = vpop.f32.mrb[0].mxu0
  %204 = vmatprep.mubr.f32.mxu0 0.0
  %205 = vmatmul.mubr.f32.gmra.mrb[0].mxu0 %v107
  %v206 = vpop.f32.mrb[0].mxu0
  %v207 = vadd.f32 %v78, %v206
  %v208 = vpop.f32.mrb[0].mxu0
  %209 = vmatprep.mubr.f32.mxu0 0.0
  %210 = vmatmul.mubr.f32.gmra.mrb[0].mxu0 %v110
  %v211 = vpop.f32.mrb[0].mxu0
  %v212 = vadd.f32 %v83, %v211
  %v213 = vpop.f32.mrb[0].mxu0
  %214 = vmatprep.mubr.f32.mxu0 0.0
  %215 = vmatmul.mubr.f32.gmra.mrb[0].mxu0 %v113
  %v216 = vpop.f32.mrb[0].mxu0
  %v217 = vadd.f32 %v88, %v216
  %v218 = vpop.f32.mrb[0].mxu0
  %219 = vdwg.mxu0
  %v220 = vmax.f32 %v182, 0.0
  %v221 = vmax.f32 %v187, 0.0
  %v222 = vmax.f32 %v192, 0.0
  %v223 = vmax.f32 %v197, 0.0
  %v224 = vmax.f32 %v202, 0.0
  %v225 = vmax.f32 %v207, 0.0
  %v226 = vmax.f32 %v212, 0.0
  %v227 = vmax.f32 %v217, 0.0
  %v228 = vld [vmem:[%s3] sm:$0xff]
  %v229 = vld [vmem:[%s3 + $0x8] sm:$0xff]
  %v230 = vld [vmem:[%s3 + $0x10] sm:$0xff]
  %v231 = vld [vmem:[%s3 + $0x18] sm:$0xff]
  %v232 = vld [vmem:[%s3 + $0x20] sm:$0xff]
  %v233 = vld [vmem:[%s3 + $0x28] sm:$0xff]
  %v234 = vld [vmem:[%s3 + $0x30] sm:$0xff]
  %v235 = vld [vmem:[%s3 + $0x38] sm:$0xff]
  %v236 = vld [vmem:[%s4] sm:$0xff]
  %v237 = vld [vmem:[%s4 + $0x8] sm:$0xff]
  %v238 = vld [vmem:[%s4 + $0x10] sm:$0xff]
  %v239 = vld [vmem:[%s4 + $0x18] sm:$0xff]
  %v240 = vld [vmem:[%s4 + $0x20] sm:$0xff]
  %v241 = vld [vmem:[%s4 + $0x28] sm:$0xff]
  %v242 = vld [vmem:[%s4 + $0x30] sm:$0xff]
  %v243 = vld [vmem:[%s4 + $0x38] sm:$0xff]
  %245 = vset.pattern.permute.xlu0 0
  %246 = vperm.xlu0 %245, %v236
  %v247 = vpop.permute.xlu0 %246
  %250 = vset.pattern.permute.xlu0 0
  %251 = vperm.xlu0 %250, %v237
  %v252 = vpop.permute.xlu0 %251
  %255 = vset.pattern.permute.xlu0 0
  %256 = vperm.xlu0 %255, %v238
  %v257 = vpop.permute.xlu0 %256
  %260 = vset.pattern.permute.xlu0 0
  %261 = vperm.xlu0 %260, %v239
  %v262 = vpop.permute.xlu0 %261
  %265 = vset.pattern.permute.xlu0 0
  %266 = vperm.xlu0 %265, %v240
  %v267 = vpop.permute.xlu0 %266
  %270 = vset.pattern.permute.xlu0 0
  %271 = vperm.xlu0 %270, %v241
  %v272 = vpop.permute.xlu0 %271
  %275 = vset.pattern.permute.xlu0 0
  %276 = vperm.xlu0 %275, %v242
  %v277 = vpop.permute.xlu0 %276
  %280 = vset.pattern.permute.xlu0 0
  %281 = vperm.xlu0 %280, %v243
  %v282 = vpop.permute.xlu0 %281
  %v285 = vsel %vm90, %v228, 0
  %v288 = vsel %vm90, %v229, 0
  %v291 = vsel %vm90, %v230, 0
  %v294 = vsel %vm90, %v231, 0
  %v297 = vsel %vm90, %v232, 0
  %v300 = vsel %vm90, %v233, 0
  %v303 = vsel %vm90, %v234, 0
  %v306 = vsel %vm90, %v235, 0
  %308 = vmatprep.subr.mxu0 0.0
  %309 = vmatpush1.msra.mxu0 %v220
  %310 = vmatprep.subr.mxu0 0.0
  %311 = vmatpush1.msra.mxu0 %v221
  %312 = vmatprep.subr.mxu0 0.0
  %313 = vmatpush1.msra.mxu0 %v222
  %314 = vmatprep.subr.mxu0 0.0
  %315 = vmatpush1.msra.mxu0 %v223
  %316 = vmatprep.subr.mxu0 0.0
  %317 = vmatpush1.msra.mxu0 %v224
  %318 = vmatprep.subr.mxu0 0.0
  %319 = vmatpush1.msra.mxu0 %v225
  %320 = vmatprep.subr.mxu0 0.0
  %321 = vmatpush1.msra.mxu0 %v226
  %322 = vmatprep.subr.mxu0 0.0
  %323 = vmatpush1.msra.mxu0 %v227
  %324 = vmatprep.subr.mxu0 0.0
  %325 = vmatpush1.msra.mxu0 0.0
  %326 = vmatprep.subr.mxu0 0.0
  %327 = vmatpush1.msra.mxu0 0.0
  %328 = vmatprep.subr.mxu0 0.0
  %329 = vmatpush1.msra.mxu0 0.0
  %330 = vmatprep.subr.mxu0 0.0
  %331 = vmatpush1.msra.mxu0 0.0
  %332 = vmatprep.subr.mxu0 0.0
  %333 = vmatpush1.msra.mxu0 0.0
  %334 = vmatprep.subr.mxu0 0.0
  %335 = vmatpush1.msra.mxu0 0.0
  %336 = vmatprep.subr.mxu0 0.0
  %337 = vmatpush1.msra.mxu0 0.0
  %338 = vmatprep.subr.mxu0 0.0
  %339 = vmatpush1.msra.mxu0 0.0
  %340 = vmatprep.subr.mxu0 0.0
  %341 = vmatpush1.msra.mxu0 0.0
  %342 = vmatprep.subr.mxu0 0.0
  %343 = vmatpush1.msra.mxu0 0.0
  %344 = vmatprep.subr.mxu0 0.0
  %345 = vmatpush1.msra.mxu0 0.0
  %346 = vmatprep.subr.mxu0 0.0
  %347 = vmatpush1.msra.mxu0 0.0
  %348 = vmatprep.subr.mxu0 0.0
  %349 = vmatpush1.msra.mxu0 0.0
  %350 = vmatprep.subr.mxu0 0.0
  %351 = vmatpush1.msra.mxu0 0.0
  %352 = vmatprep.subr.mxu0 0.0
  %353 = vmatpush1.msra.mxu0 0.0
  %354 = vmatprep.subr.mxu0 0.0
  %355 = vmatpush1.msra.mxu0 0.0
  %356 = vmatprep.subr.mxu0 0.0
  %357 = vmatpush1.msra.mxu0 0.0
  %358 = vmatprep.subr.mxu0 0.0
  %359 = vmatpush1.msra.mxu0 0.0
  %360 = vmatprep.subr.mxu0 0.0
  %361 = vmatpush1.msra.mxu0 0.0
  %362 = vmatprep.subr.mxu0 0.0
  %363 = vmatpush1.msra.mxu0 0.0
  %364 = vmatprep.subr.mxu0 0.0
  %365 = vmatpush1.msra.mxu0 0.0
  %366 = vmatprep.subr.mxu0 0.0
  %367 = vmatpush1.msra.mxu0 0.0
  %368 = vmatprep.subr.mxu0 0.0
  %369 = vmatpush1.msra.mxu0 0.0
  %370 = vmatprep.subr.mxu0 0.0
  %371 = vmatpush1.msra.mxu0 0.0
  %372 = vmatprep.mubr.f32.mxu0 0.0
  %373 = vmatmul.mubr.f32.gmra.mrb[0].mxu0 %v285
  %v374 = vpop.f32.mrb[0].mxu0
  %v375 = vadd.f32 %v247, %v374
  %v376 = vpop.f32.mrb[0].mxu0
  %377 = vmatprep.mubr.f32.mxu0 0.0
  %378 = vmatmul.mubr.f32.gmra.mrb[0].mxu0 %v288
  %v379 = vpop.f32.mrb[0].mxu0
  %v380 = vadd.f32 %v252, %v379
  %v381 = vpop.f32.mrb[0].mxu0
  %382 = vmatprep.mubr.f32.mxu0 0.0
  %383 = vmatmul.mubr.f32.gmra.mrb[0].mxu0 %v291
  %v384 = vpop.f32.mrb[0].mxu0
  %v385 = vadd.f32 %v257, %v384
  %v386 = vpop.f32.mrb[0].mxu0
  %387 = vmatprep.mubr.f32.mxu0 0.0
  %388 = vmatmul.mubr.f32.gmra.mrb[0].mxu0 %v294
  %v389 = vpop.f32.mrb[0].mxu0
  %v390 = vadd.f32 %v262, %v389
  %v391 = vpop.f32.mrb[0].mxu0
  %392 = vmatprep.mubr.f32.mxu0 0.0
  %393 = vmatmul.mubr.f32.gmra.mrb[0].mxu0 %v297
  %v394 = vpop.f32.mrb[0].mxu0
  %v395 = vadd.f32 %v267, %v394
  %v396 = vpop.f32.mrb[0].mxu0
  %397 = vmatprep.mubr.f32.mxu0 0.0
  %398 = vmatmul.mubr.f32.gmra.mrb[0].mxu0 %v300
  %v399 = vpop.f32.mrb[0].mxu0
  %v400 = vadd.f32 %v272, %v399
  %v401 = vpop.f32.mrb[0].mxu0
  %402 = vmatprep.mubr.f32.mxu0 0.0
  %403 = vmatmul.mubr.f32.gmra.mrb[0].mxu0 %v303
  %v404 = vpop.f32.mrb[0].mxu0
  %v405 = vadd.f32 %v277, %v404
  %v406 = vpop.f32.mrb[0].mxu0
  %407 = vmatprep.mubr.f32.mxu0 0.0
  %408 = vmatmul.mubr.f32.gmra.mrb[0].mxu0 %v306
  %v409 = vpop.f32.mrb[0].mxu0
  %v410 = vadd.f32 %v282, %v409
  %v411 = vpop.f32.mrb[0].mxu0
  %412 = vdwg.mxu0
  %v413 = vmax.f32 %v375, 0.0
  %v414 = vmax.f32 %v380, 0.0
  %v415 = vmax.f32 %v385, 0.0
  %v416 = vmax.f32 %v390, 0.0
  %v417 = vmax.f32 %v395, 0.0
  %v418 = vmax.f32 %v400, 0.0
  %v419 = vmax.f32 %v405, 0.0
  %v420 = vmax.f32 %v410, 0.0
  %v421 = vld [vmem:[%s5] sm:$0xff]
  %v422 = vld [vmem:[%s6] sm:$0xff]
  %424 = vset.pattern.permute.xlu0 0
  %425 = vperm.xlu0 %424, %v422
  %v426 = vpop.permute.xlu0 %425
  %v429 = vsel %vm90, %v421, 0
  %431 = vmatprep.subr.mxu0 0.0
  %432 = vmatpush1.msra.mxu0 %v413
  %433 = vmatprep.subr.mxu0 0.0
  %434 = vmatpush1.msra.mxu0 %v414
  %435 = vmatprep.subr.mxu0 0.0
  %436 = vmatpush1.msra.mxu0 %v415
  %437 = vmatprep.subr.mxu0 0.0
  %438 = vmatpush1.msra.mxu0 %v416
  %439 = vmatprep.subr.mxu0 0.0
  %440 = vmatpush1.msra.mxu0 %v417
  %441 = vmatprep.subr.mxu0 0.0
  %442 = vmatpush1.msra.mxu0 %v418
  %443 = vmatprep.subr.mxu0 0.0
  %444 = vmatpush1.msra.mxu0 %v419
  %445 = vmatprep.subr.mxu0 0.0
  %446 = vmatpush1.msra.mxu0 %v420
  %447 = vmatprep.subr.mxu0 0.0
  %448 = vmatpush1.msra.mxu0 0.0
  %449 = vmatprep.subr.mxu0 0.0
  %450 = vmatpush1.msra.mxu0 0.0
  %451 = vmatprep.subr.mxu0 0.0
  %452 = vmatpush1.msra.mxu0 0.0
  %453 = vmatprep.subr.mxu0 0.0
  %454 = vmatpush1.msra.mxu0 0.0
  %455 = vmatprep.subr.mxu0 0.0
  %456 = vmatpush1.msra.mxu0 0.0
  %457 = vmatprep.subr.mxu0 0.0
  %458 = vmatpush1.msra.mxu0 0.0
  %459 = vmatprep.subr.mxu0 0.0
  %460 = vmatpush1.msra.mxu0 0.0
  %461 = vmatprep.subr.mxu0 0.0
  %462 = vmatpush1.msra.mxu0 0.0
  %463 = vmatprep.subr.mxu0 0.0
  %464 = vmatpush1.msra.mxu0 0.0
  %465 = vmatprep.subr.mxu0 0.0
  %466 = vmatpush1.msra.mxu0 0.0
  %467 = vmatprep.subr.mxu0 0.0
  %468 = vmatpush1.msra.mxu0 0.0
  %469 = vmatprep.subr.mxu0 0.0
  %470 = vmatpush1.msra.mxu0 0.0
  %471 = vmatprep.subr.mxu0 0.0
  %472 = vmatpush1.msra.mxu0 0.0
  %473 = vmatprep.subr.mxu0 0.0
  %474 = vmatpush1.msra.mxu0 0.0
  %475 = vmatprep.subr.mxu0 0.0
  %476 = vmatpush1.msra.mxu0 0.0
  %477 = vmatprep.subr.mxu0 0.0
  %478 = vmatpush1.msra.mxu0 0.0
  %479 = vmatprep.subr.mxu0 0.0
  %480 = vmatpush1.msra.mxu0 0.0
  %481 = vmatprep.subr.mxu0 0.0
  %482 = vmatpush1.msra.mxu0 0.0
  %483 = vmatprep.subr.mxu0 0.0
  %484 = vmatpush1.msra.mxu0 0.0
  %485 = vmatprep.subr.mxu0 0.0
  %486 = vmatpush1.msra.mxu0 0.0
  %487 = vmatprep.subr.mxu0 0.0
  %488 = vmatpush1.msra.mxu0 0.0
  %489 = vmatprep.subr.mxu0 0.0
  %490 = vmatpush1.msra.mxu0 0.0
  %491 = vmatprep.subr.mxu0 0.0
  %492 = vmatpush1.msra.mxu0 0.0
  %493 = vmatprep.subr.mxu0 0.0
  %494 = vmatpush1.msra.mxu0 0.0
  %495 = vmatprep.mubr.f32.mxu0 0.0
  %496 = vmatmul.mubr.f32.gmra.mrb[0].mxu0 %v429
  %v497 = vpop.f32.mrb[0].mxu0
  %v498 = vadd.f32 %v426, %v497
  %v499 = vpop.f32.mrb[0].mxu0
  %500 = vdwg.mxu0
  %v501 = vlaneseq
  %v502 = vshrl.u32 %v501, 7
  %v503 = vmax.f32 %v498, 0.0
  %vm504 = vcmp.ne.f32.partialorder %v498, %v498
  %v505 = vadd.f32 %v498, 0.0
  %v506 = vand.u32 2147483647, %v498
  %v507 = vsub.f32 0.0, %v506
  %v508 = vmul.f32 %v507, 1.442695
  %v509 = vpow.pop %v508
  %v510 = vadd.f32 %v509, 1.0
  %v511 = vlog2.pop %v510
  %v512 = vmul.f32 %v511, 0.6931472
  %v513 = vmul.f32 -0.5, %v509
  %v514 = vadd.f32 %v513, 1.0
  %v515 = vmul.f32 %v514, %v509
  %v516 = vand.u32 2147483647, %v509
  %vm517 = vcmp.lt.f32.partialorder %v516, 0.0004427343
  %v518 = vsel %vm517, %v515, %v512
  %v519 = vadd.f32 %v503, %v518
  %v520 = vsel %vm504, %v505, %v519
  %v521 = vadd.f32 %v520, 0.01
  %v522 = vtanh.pop %v498
  %v523 = vmul.f32 %v522, 0.9
  %vm524 = vcmp.eq.s32.totalorder %v502, 2
  %vm525 = vcmp.eq.s32.totalorder %v502, 3
  %vm526 = vmor %vm524, %vm525
  %vm527 = vcmp.eq.s32.totalorder %v502, 4
  %v528 = vsel %vm527, %v523, %v498
  %v529 = vsel %vm526, %v521, %v528
  %530 = vst [vmem:[%s7] sm:$0xff] %v529
  // Predicated region
  $region30: #{output_model_forward.1} parent=0 // pred_check
    _
  $region31: #{output_model_forward.1} parent=0 // pred_check_branch
    %532 = sbr.rel (0) target = $region33
  $region32: #{output_model_forward.1} parent=0 // pred_region
    _
  $region33: #{output_model_forward.1} parent=0 // pred_fallthru
    _
  // Predicated region
  $region34: #{output_model_forward.1} parent=0 // pred_check
    _
  $region35: #{output_model_forward.1} parent=0 // pred_check_branch
    %534 = sbr.rel (0) target = $region37
  $region36: #{output_model_forward.1} parent=0 // pred_region
    _
  $region37: #{output_model_forward.1} parent=0 // pred_fallthru
    _

</llo_original>
